<compile_context>
chip_gen: v7x
topology: tpu7x:2x2x1
jax: 0.10.0
libtpu: 0.0.40
codegen_flags: <defaults>
</compile_context>

<pallas_src>
import math
import functools

import jax
import jax.numpy as jnp
from jax.experimental import pallas as pl
from jax.experimental.pallas import tpu as pltpu


# ---------------------------------------------------------------------------
# Kernels
# ---------------------------------------------------------------------------
def _pe_add_kernel(x_ref, pe_ref, o_ref, *, batch: int):
    # x_ref: (TS, B*D)   pe_ref: (TS, D)   o_ref: (TS, B*D)
    pe = jnp.tile(pe_ref[...], (1, batch)).astype(x_ref.dtype)
    o_ref[...] = (x_ref[...] + pe).astype(o_ref.dtype)


def _pe_add_dropout_kernel(x_ref, pe_ref, bits_ref, o_ref, *,
                           batch: int, threshold: int, scale: float):
    # Inverted dropout: P(drop) = threshold / 2**32 ≈ p_drop; kept values * 1/(1-p).
    pe = jnp.tile(pe_ref[...], (1, batch)).astype(x_ref.dtype)
    y = x_ref[...] + pe
    keep = bits_ref[...] >= jnp.uint32(threshold)
    o_ref[...] = jnp.where(keep, y * jnp.asarray(scale, y.dtype),
                           jnp.zeros_like(y)).astype(o_ref.dtype)


# ---------------------------------------------------------------------------
# Tile selection: biggest seq tile (multiple of 8, dividing S) that keeps the
# x block around `target_bytes`; whole array in one step when it already fits.
# ---------------------------------------------------------------------------
def _pick_seq_tile(S, row_bytes, target_bytes):
    max_rows = max(1, target_bytes // max(1, row_bytes))
    if S <= max_rows:
        return S                      # single block covering the full array
    t = (max_rows // 8) * 8
    while t >= 8:
        if S % t == 0:
            return t
        t -= 8
    return S                          # fallback: single whole-array block


# ---------------------------------------------------------------------------
# Wrapper
# ---------------------------------------------------------------------------
def positional_encoding_forward(x, pe, *, p_drop=0.1, training=False,
                                rng_key=None, block_bytes=2 * 1024 * 1024):
    """x: [S, B, D]; pe: [max_len, 1, D] (the module's buffer)."""
    S, B, D = x.shape

    # Lane-dense 2D views: seq -> sublanes, B*D -> lanes.
    x2 = x.reshape(S, B * D)
    pe2 = pe[:S].reshape(S, D)

    itemsize = jnp.dtype(x.dtype).itemsize
    seq_tile = _pick_seq_tile(S, B * D * itemsize, block_bytes)
    grid = (S // seq_tile,)

    x_spec = pl.BlockSpec((seq_tile, B * D), lambda i: (i, 0))
    pe_spec = pl.BlockSpec((seq_tile, D), lambda i: (i, 0))
    bits_spec = pl.BlockSpec((seq_tile, B * D), lambda i: (i, 0))
    out_spec = pl.BlockSpec((seq_tile, B * D), lambda i: (i, 0))
    out_shape = jax.ShapeDtypeStruct((S, B * D), x.dtype)

    cparams = pltpu.CompilerParams(
        dimension_semantics=("parallel",),          # steps independent -> megacore OK
        vmem_limit_bytes=32 * 1024 * 1024,
    )

    use_dropout = bool(training) and p_drop > 0.0
    if not use_dropout:
        out2 = pl.pallas_call(
            functools.partial(_pe_add_kernel, batch=B),
            out_shape=out_shape,
            grid=grid,
            in_specs=[x_spec, pe_spec],
            out_specs=out_spec,
            compiler_params=cparams,
        )(x2, pe2)
    else:
        if rng_key is None:
            raise ValueError("training-mode dropout requires rng_key")
        # TODO(synk): dropout mask uses JAX's PRNG stream, not torch's RNG
        # stream (probability and 1/(1-p) inverted scaling match nn.Dropout).
        bits = jax.random.bits(rng_key, (S, B * D), dtype=jnp.uint32)
        threshold = min(int(round(p_drop * (2 ** 32))), 2 ** 32 - 1)
        scale = 1.0 / (1.0 - p_drop)
        out2 = pl.pallas_call(
            functools.partial(_pe_add_dropout_kernel, batch=B,
                              threshold=threshold, scale=scale),
            out_shape=out_shape,
            grid=grid,
            in_specs=[x_spec, pe_spec, bits_spec],
            out_specs=out_spec,
            compiler_params=cparams,
        )(x2, pe2, bits)

    return out2.reshape(S, B, D)


# ---------------------------------------------------------------------------
# Buffer setup — same math as the PyTorch __init__
# ---------------------------------------------------------------------------
def build_pe_table(max_len, d_model, dtype=jnp.float32):
    position = jnp.arange(0, max_len, dtype=jnp.float32)[:, None]            # [max_len, 1]
    div_term = jnp.exp(
        jnp.arange(0, d_model, 2, dtype=jnp.float32) * (-math.log(10000.0) / d_model)
    )                                                                        # [d_model/2]
    pe = jnp.zeros((max_len, d_model), dtype=jnp.float32)
    pe = pe.at[:, 0::2].set(jnp.sin(position * div_term))
    pe = pe.at[:, 1::2].set(jnp.cos(position * div_term))
    # unsqueeze(0).transpose(0, 1) -> [max_len, 1, d_model]
    return pe[:, None, :].astype(dtype)


# ---------------------------------------------------------------------------
# Main
# ---------------------------------------------------------------------------
if __name__ == "__main__":
    SEQ, BATCH, D_MODEL, MAX_LEN = 8, 2, 512, 64     # module default d_model=512
    P_DROP = 0.1

    key = jax.random.PRNGKey(0)
    kx, kd = jax.random.split(key)
    x = jax.random.normal(kx, (SEQ, BATCH, D_MODEL), dtype=jnp.float32)
    pe = build_pe_table(MAX_LEN, D_MODEL)

    # Eval-mode forward (dropout is identity) — matches module.eval() exactly.
    out = jax.block_until_ready(
        positional_encoding_forward(x, pe, p_drop=P_DROP, training=False))
    ref = x + pe[:SEQ]
    assert out.shape == (SEQ, BATCH, D_MODEL)
    assert jnp.allclose(out, ref, atol=1e-6, rtol=1e-6), "eval-mode mismatch vs reference"

    # Training-mode forward (inverted dropout inside the kernel).
    out_train = jax.block_until_ready(
        positional_encoding_forward(x, pe, p_drop=P_DROP, training=True, rng_key=kd))
    # Exact reference using the same random bits the wrapper generated.
    bits = jax.random.bits(kd, (SEQ, BATCH * D_MODEL), dtype=jnp.uint32)
    bits = bits.reshape(SEQ, BATCH, D_MODEL)
    thr = jnp.uint32(min(int(round(P_DROP * (2 ** 32))), 2 ** 32 - 1))
    ref_train = jnp.where(bits >= thr, ref * (1.0 / (1.0 - P_DROP)), 0.0)
    assert jnp.allclose(out_train, ref_train, atol=1e-5, rtol=1e-5), "train-mode mismatch"

    print("KERNEL_OK")
</pallas_src>

<mosaic_0001>
module attributes {stable_mosaic.version = 11 : i64} {
  func.func @_pe_add_kernel(%arg0: i32, %arg1: memref<8x1024xf32, #tpu.memory_space<vmem>>, %arg2: memref<8x512xf32, #tpu.memory_space<vmem>>, %arg3: memref<8x1024xf32, #tpu.memory_space<vmem>>) attributes {dimension_semantics = [#tpu.dimension_semantics<parallel>], iteration_bounds = array<i64: 1>, scalar_prefetch = 0 : i64, scratch_operands = 0 : i64, tpu.core_type = #tpu.core_type<tc>, window_params = [{transform_indices = @transform_0, window_bounds = array<i64: 8, 1024>}, {transform_indices = @transform_1, window_bounds = array<i64: 8, 512>}, {transform_indices = @transform_2, window_bounds = array<i64: 8, 1024>}]} {
    %c0 = arith.constant 0 : index
    %c0_0 = arith.constant 0 : index
    %0 = vector.load %arg2[%c0, %c0_0] : memref<8x512xf32, #tpu.memory_space<vmem>>, vector<8x512xf32>
    %1 = tpu.concatenate %0, %0 in 1 : vector<8x512xf32>, vector<8x512xf32> -> vector<8x1024xf32>
    %c0_1 = arith.constant 0 : index
    %c0_2 = arith.constant 0 : index
    %2 = vector.load %arg1[%c0_1, %c0_2] : memref<8x1024xf32, #tpu.memory_space<vmem>>, vector<8x1024xf32>
    %3 = arith.addf %2, %1 : vector<8x1024xf32>
    %c0_3 = arith.constant 0 : index
    %c0_4 = arith.constant 0 : index
    %4 = vector.load %arg3[%c0_3, %c0_4] : memref<8x1024xf32, #tpu.memory_space<vmem>>, vector<8x1024xf32>
    tpu.vector_store %arg3[%c0_3, %c0_4], %3 {strides = array<i32>} : memref<8x1024xf32, #tpu.memory_space<vmem>>, vector<8x1024xf32>,
    return
  }
  func.func @transform_0(%arg0: i32) -> (i32, i32) {
    %c0_i32 = arith.constant 0 : i32
    %c0_i32_0 = arith.constant 0 : i32
    return %arg0, %c0_i32 : i32, i32
  }
  func.func @transform_1(%arg0: i32) -> (i32, i32) {
    %c0_i32 = arith.constant 0 : i32
    %c0_i32_0 = arith.constant 0 : i32
    return %arg0, %c0_i32 : i32, i32
  }
  func.func @transform_2(%arg0: i32) -> (i32, i32) {
    %c0_i32 = arith.constant 0 : i32
    %c0_i32_0 = arith.constant 0 : i32
    return %arg0, %c0_i32 : i32, i32
  }
}

</mosaic_0001>

<llo_original>
// kernel: tpu_custom_call.1
$region0: #{tpu_custom_call.1}
  #allocation0 [shape = 'u32[]', space=smem, size = 0x4, offset = 0x4, fixed_abs, tag = 'smem constant byte address 0x4 - core index']
  #allocation1 [shape = 'u32[144,128]{1,0:T(1,128)}', space=vmem, size = 0x12000, scoped, tag = 'internal scratch']
  %s0 = inlined_call_operand.hbm [shape: f32[8,1024], index: 0, kind: input, shape index: {}]
  %s1 = inlined_call_operand.hbm [shape: f32[8,512], index: 1, kind: input, shape index: {}]
  %s2 = inlined_call_operand.hbm [shape: f32[8,1024], index: 2, kind: output, shape index: {}]
  %s3 = sld [smem:[#allocation0]]
  $region26: #{tpu_custom_call.1} parent=0
    _
  %s5 = ssub.s32 1, %s3
  %s6 = scalar_select 0, %s5, %s3
  $region1: #{tpu_custom_call.1} parent=0
    #allocation2 [shape = 'u8[32768]{0}', space=vmem, size = 0x8000, scoped, tag = 'input window, operand 0, single buffered']
    #allocation3 [shape = 's32[1]{0}', space=sflag, size = 0x4, scoped, tag = 'scoped memory for tpu_custom_call.1']
    #allocation4 [shape = 's32[1]{0}', space=sflag, size = 0x4, scoped, tag = 'scoped memory for tpu_custom_call.1']
    #allocation5 [shape = 'u8[16384]{0}', space=vmem, size = 0x4000, scoped, tag = 'input window, operand 1, single buffered']
    #allocation6 [shape = 's32[1]{0}', space=sflag, size = 0x4, scoped, tag = 'scoped memory for tpu_custom_call.1']
    #allocation7 [shape = 'u8[32768]{0}', space=vmem, size = 0x8000, scoped, tag = 'output window, operand 0, single buffered']
    %7 = vsyncpa [#allocation3], 0
    %8 = vsyncpa [#allocation6], 0
    %9 = vsyncpa [#allocation4], 0
    // Predicated region
    $region2: #{tpu_custom_call.1} parent=1 // pred_check
      _
    $region3: #{tpu_custom_call.1} parent=1 // pred_check_branch
      %11 = sbr.rel (0) target = $region5
    $region4: #{tpu_custom_call.1} parent=1 // pred_region
      %s13 = ssub.s32 1024, 1024
      %14 = vsyncadd [#allocation3], %s13
      %s16 = sshll.u32 [#allocation2], 4
      %s17 = int_to_ptr.vmem [resolvable:$true] %s16
      %19 = dma.hbm_to_vmem [thread:$0]  %s0, 1024, %s17, [#allocation3]
    $region5: #{tpu_custom_call.1} parent=1 // pred_fallthru
      _
    // Predicated region
    $region6: #{tpu_custom_call.1} parent=1 // pred_check
      _
    $region7: #{tpu_custom_call.1} parent=1 // pred_check_branch
      %21 = sbr.rel (0) target = $region9
    $region8: #{tpu_custom_call.1} parent=1 // pred_region
      %s23 = ssub.s32 512, 512
      %24 = vsyncadd [#allocation6], %s23
      %s26 = sshll.u32 [#allocation5], 4
      %s27 = int_to_ptr.vmem [resolvable:$true] %s26
      %29 = dma.hbm_to_vmem [thread:$0]  %s1, 512, %s27, [#allocation6]
    $region9: #{tpu_custom_call.1} parent=1 // pred_fallthru
      _
    // Predicated region
    $region10: #{tpu_custom_call.1} parent=1 // pred_check
      _
    $region11: #{tpu_custom_call.1} parent=1 // pred_check_branch
      %31 = sbr.rel (0) target = $region13
    $region12: #{tpu_custom_call.1} parent=1 // pred_region
      %32 = dma.done [#allocation3], 1024
    $region13: #{tpu_custom_call.1} parent=1 // pred_fallthru
      _
    // Predicated region
    $region14: #{tpu_custom_call.1} parent=1 // pred_check
      _
    $region15: #{tpu_custom_call.1} parent=1 // pred_check_branch
      %34 = sbr.rel (0) target = $region17
    $region16: #{tpu_custom_call.1} parent=1 // pred_region
      %35 = dma.done [#allocation6], 512
    $region17: #{tpu_custom_call.1} parent=1 // pred_fallthru
      _
    %v36 = vld [vmem:[#allocation5] sm:$0xff]
    %v37 = vld [vmem:[#allocation5 + $0x8] sm:$0xff]
    %v38 = vld [vmem:[#allocation5 + $0x10] sm:$0xff]
    %v39 = vld [vmem:[#allocation5 + $0x18] sm:$0xff]
    %v40 = vld [vmem:[#allocation2] sm:$0xff]
    %v41 = vld [vmem:[#allocation2 + $0x8] sm:$0xff]
    %v42 = vld [vmem:[#allocation2 + $0x10] sm:$0xff]
    %v43 = vld [vmem:[#allocation2 + $0x18] sm:$0xff]
    %v44 = vld [vmem:[#allocation2 + $0x20] sm:$0xff]
    %v45 = vld [vmem:[#allocation2 + $0x28] sm:$0xff]
    %v46 = vld [vmem:[#allocation2 + $0x30] sm:$0xff]
    %v47 = vld [vmem:[#allocation2 + $0x38] sm:$0xff]
    %v48 = vadd.f32 %v40, %v36
    %v49 = vadd.f32 %v41, %v37
    %v50 = vadd.f32 %v42, %v38
    %v51 = vadd.f32 %v43, %v39
    %v52 = vadd.f32 %v44, %v36
    %v53 = vadd.f32 %v45, %v37
    %v54 = vadd.f32 %v46, %v38
    %v55 = vadd.f32 %v47, %v39
    %56 = vst [vmem:[#allocation7] sm:$0xff] %v48
    %57 = vst [vmem:[#allocation7 + $0x8] sm:$0xff] %v49
    %58 = vst [vmem:[#allocation7 + $0x10] sm:$0xff] %v50
    %59 = vst [vmem:[#allocation7 + $0x18] sm:$0xff] %v51
    %60 = vst [vmem:[#allocation7 + $0x20] sm:$0xff] %v52
    %61 = vst [vmem:[#allocation7 + $0x28] sm:$0xff] %v53
    %62 = vst [vmem:[#allocation7 + $0x30] sm:$0xff] %v54
    %63 = vst [vmem:[#allocation7 + $0x38] sm:$0xff] %v55
    // Predicated region
    $region18: #{tpu_custom_call.1} parent=1 // pred_check
      _
    $region19: #{tpu_custom_call.1} parent=1 // pred_check_branch
      %65 = sbr.rel (0) target = $region21
    $region20: #{tpu_custom_call.1} parent=1 // pred_region
      %s67 = ssub.s32 1024, 1024
      %68 = vsyncadd [#allocation4], %s67
      %s70 = sshll.u32 [#allocation7], 4
      %s71 = int_to_ptr.vmem [resolvable:$true] %s70
      %73 = dma.vmem_to_hbm [thread:$0]  %s71, 1024, %s2, [#allocation4]
    $region21: #{tpu_custom_call.1} parent=1 // pred_fallthru
      _
    // Predicated region
    $region22: #{tpu_custom_call.1} parent=1 // pred_check
      _
    $region23: #{tpu_custom_call.1} parent=1 // pred_check_branch
      %75 = sbr.rel (0) target = $region25
    $region24: #{tpu_custom_call.1} parent=1 // pred_region
      %76 = dma.done [#allocation4], 1024
    $region25: #{tpu_custom_call.1} parent=1 // pred_fallthru
      _
    %77 = vsyncpa [#allocation3], 1
    %78 = vsyncpa [#allocation6], 1
    %79 = vsyncpa [#allocation4], 1

</llo_original>
